<compile_context>
chip_gen: v7x
topology: tpu7x:2x2x1
jax: 0.10.0
libtpu: 0.0.40
codegen_flags: <defaults>
</compile_context>

<pallas_src>
import functools

import jax
import jax.numpy as jnp
from jax.experimental import pallas as pl
from jax.experimental.pallas import tpu as pltpu


def _actor_kernel(action_dim,
                  x_ref, w1_ref, b1_ref, w2_ref, b2_ref, w3_ref, b3_ref, out_ref):
    # x_ref: (TB, D) bf16; w*_ref bf16; b*_ref f32; out_ref: (A, TB, D) f32.
    x = x_ref[...]

    # fc1 + ReLU  (bf16 operands, f32 accumulation on the MXU)
    h1 = jnp.dot(x, w1_ref[...], preferred_element_type=jnp.float32) + b1_ref[...]
    h1 = jnp.maximum(h1, 0.0).astype(jnp.bfloat16)                      # (TB, H)

    # fc2 + ReLU
    h2 = jnp.dot(h1, w2_ref[...], preferred_element_type=jnp.float32) + b2_ref[...]
    h2 = jnp.maximum(h2, 0.0).astype(jnp.bfloat16)                      # (TB, H)

    # fc3: one lane-aligned (TB, D) tile per action (== torch .view(B, A, D)[:, a, :]).
    logits = [
        jnp.dot(h2, w3_ref[a], preferred_element_type=jnp.float32) + b3_ref[a]
        for a in range(action_dim)
    ]

    # softmax over the action axis: elementwise max / exp / sum across the A tiles.
    m = logits[0]
    for a in range(1, action_dim):
        m = jnp.maximum(m, logits[a])
    exps = [jnp.exp(l - m) for l in logits]
    denom = exps[0]
    for a in range(1, action_dim):
        denom = denom + exps[a]
    inv = pl.reciprocal(denom, approx=True)                             # EUP vrcp

    for a in range(action_dim):
        out_ref[a, :, :] = (exps[a] * inv).astype(out_ref.dtype)


def actor_policy_net_forward(x, params, action_dim, input_dim, hidden_dim, block_b=128):
    """x: (B, input_dim) float32. Returns (B, action_dim, input_dim), softmax over action dim."""
    B = x.shape[0]
    w1, b1, w2, b2, w3, b3 = params

    # bf16 matmul operands; biases + epilogue stay f32.
    x_bf = x.astype(jnp.bfloat16)
    w1_bf = w1.astype(jnp.bfloat16)
    w2_bf = w2.astype(jnp.bfloat16)
    # fc3 split into per-action column blocks: (H, A*D) -> (A, H, D); bias -> (A, 1, D).
    w3_blk = (w3.reshape(hidden_dim, action_dim, input_dim)
                .transpose(1, 0, 2).astype(jnp.bfloat16))
    b3_blk = b3.reshape(1, action_dim, input_dim).transpose(1, 0, 2)

    tb = min(B, block_b)
    grid = (pl.cdiv(B, tb),)

    flops = 2 * B * (input_dim * hidden_dim
                     + hidden_dim * hidden_dim
                     + hidden_dim * action_dim * input_dim)
    transcendentals = B * action_dim * input_dim + B * input_dim
    bytes_accessed = (x_bf.size * 2 + w1_bf.size * 2 + w2_bf.size * 2 + w3_blk.size * 2
                      + b1.size * 4 + b2.size * 4 + b3_blk.size * 4
                      + B * action_dim * input_dim * 4)

    kernel = functools.partial(_actor_kernel, action_dim)
    # TODO(synk): if hidden_dim ever grows into the thousands, add a K-tiling grid axis for
    # fc2/fc3 instead of keeping full (H, H) weights resident (v7x has half the VMEM).
    out = pl.pallas_call(
        kernel,
        out_shape=jax.ShapeDtypeStruct((action_dim, B, input_dim), jnp.float32),
        grid=grid,
        in_specs=[
            pl.BlockSpec((tb, input_dim), lambda i: (i, 0)),
            pl.BlockSpec((input_dim, hidden_dim), lambda i: (0, 0)),
            pl.BlockSpec((1, hidden_dim), lambda i: (0, 0)),
            pl.BlockSpec((hidden_dim, hidden_dim), lambda i: (0, 0)),
            pl.BlockSpec((1, hidden_dim), lambda i: (0, 0)),
            pl.BlockSpec((action_dim, hidden_dim, input_dim), lambda i: (0, 0, 0)),
            pl.BlockSpec((action_dim, 1, input_dim), lambda i: (0, 0, 0)),
        ],
        out_specs=pl.BlockSpec((action_dim, tb, input_dim), lambda i: (0, i, 0)),
        compiler_params=pltpu.CompilerParams(
            dimension_semantics=("parallel",)),
        cost_estimate=pl.CostEstimate(
            flops=flops, transcendentals=transcendentals, bytes_accessed=bytes_accessed),
    )(x_bf, w1_bf, b1, w2_bf, b2, w3_blk, b3_blk)

    # Kernel wrote an action-major (A, B, D) slab of full tiles; transpose back to the
    # module's (B, A, D) layout in the wrapper (layout plumbing, not compute).
    return jnp.transpose(out, (1, 0, 2))


def init_params(key, input_dim, action_dim, hidden_dim):
    """Deterministic synthetic params. Stored as (in, out) = transpose of PyTorch's (out, in)."""
    k1, k2, k3, k4, k5, k6 = jax.random.split(key, 6)
    scale1 = 1.0 / jnp.sqrt(input_dim)
    scale2 = 1.0 / jnp.sqrt(hidden_dim)
    w1 = jax.random.uniform(k1, (input_dim, hidden_dim), jnp.float32, -scale1, scale1)
    b1 = jax.random.uniform(k2, (1, hidden_dim), jnp.float32, -scale1, scale1)
    w2 = jax.random.uniform(k3, (hidden_dim, hidden_dim), jnp.float32, -scale2, scale2)
    b2 = jax.random.uniform(k4, (1, hidden_dim), jnp.float32, -scale2, scale2)
    w3 = jax.random.uniform(k5, (hidden_dim, action_dim * input_dim), jnp.float32, -scale2, scale2)
    b3 = jax.random.uniform(k6, (1, action_dim * input_dim), jnp.float32, -scale2, scale2)
    return (w1, b1, w2, b2, w3, b3)


def reference_forward(x, params, action_dim, input_dim):
    """Pure-JAX f32 reference mirroring the PyTorch forward."""
    w1, b1, w2, b2, w3, b3 = params
    h = jnp.maximum(x @ w1 + b1, 0.0)
    h = jnp.maximum(h @ w2 + b2, 0.0)
    logits = h @ w3 + b3
    logits = logits.reshape(x.shape[0], action_dim, input_dim)
    return jax.nn.softmax(logits, axis=1)


if __name__ == "__main__":
    input_dim = 16
    action_dim = 3
    hidden_dim = 64
    batch = 2

    key = jax.random.PRNGKey(0)
    kx, kp = jax.random.split(key)
    x = jax.random.normal(kx, (batch, input_dim), jnp.float32)
    params = init_params(kp, input_dim, action_dim, hidden_dim)

    out = actor_policy_net_forward(x, params, action_dim, input_dim, hidden_dim)
    out = jax.block_until_ready(out)

    ref = reference_forward(x, params, action_dim, input_dim)
    assert out.shape == (batch, action_dim, input_dim)
    # bf16 matmul operands + approx reciprocal -> loosened tolerance vs f32 reference.
    assert jnp.allclose(out, ref, atol=2e-2, rtol=2e-2), "mismatch vs reference"
    # softmax over action dim should sum to ~1
    assert jnp.allclose(out.sum(axis=1), 1.0, atol=1e-2)

    print("KERNEL_OK")
</pallas_src>

<mosaic_0001>
module attributes {stable_mosaic.version = 11 : i64} {
  func.func @_actor_kernel(%arg0: i32, %arg1: memref<2x16xbf16, #tpu.memory_space<vmem>>, %arg2: memref<16x64xbf16, #tpu.memory_space<vmem>>, %arg3: memref<1x64xf32, #tpu.memory_space<vmem>>, %arg4: memref<64x64xbf16, #tpu.memory_space<vmem>>, %arg5: memref<1x64xf32, #tpu.memory_space<vmem>>, %arg6: memref<3x64x16xbf16, #tpu.memory_space<vmem>>, %arg7: memref<3x1x16xf32, #tpu.memory_space<vmem>>, %arg8: memref<3x2x16xf32, #tpu.memory_space<vmem>>) attributes {dimension_semantics = [#tpu.dimension_semantics<parallel>], iteration_bounds = array<i64: 1>, scalar_prefetch = 0 : i64, scratch_operands = 0 : i64, tpu.core_type = #tpu.core_type<tc>, window_params = [{transform_indices = @transform_0, window_bounds = array<i64: 2, 16>}, {pipeline_mode = #tpu.pipeline_mode<synchronous>, transform_indices = @transform_1, window_bounds = array<i64: 16, 64>}, {pipeline_mode = #tpu.pipeline_mode<synchronous>, transform_indices = @transform_2, window_bounds = array<i64: 1, 64>}, {pipeline_mode = #tpu.pipeline_mode<synchronous>, transform_indices = @transform_3, window_bounds = array<i64: 64, 64>}, {pipeline_mode = #tpu.pipeline_mode<synchronous>, transform_indices = @transform_4, window_bounds = array<i64: 1, 64>}, {pipeline_mode = #tpu.pipeline_mode<synchronous>, transform_indices = @transform_5, window_bounds = array<i64: 3, 64, 16>}, {pipeline_mode = #tpu.pipeline_mode<synchronous>, transform_indices = @transform_6, window_bounds = array<i64: 3, 1, 16>}, {transform_indices = @transform_7, window_bounds = array<i64: 3, 2, 16>}]} {
    %c0 = arith.constant 0 : index
    %c0_0 = arith.constant 0 : index
    %0 = vector.load %arg1[%c0, %c0_0] : memref<2x16xbf16, #tpu.memory_space<vmem>>, vector<2x16xbf16>
    %c0_1 = arith.constant 0 : index
    %c0_2 = arith.constant 0 : index
    %1 = vector.load %arg2[%c0_1, %c0_2] : memref<16x64xbf16, #tpu.memory_space<vmem>>, vector<16x64xbf16>
    %cst = arith.constant dense<0.000000e+00> : vector<2x64xf32>
    %2 = tpu.matmul %0, %1, %cst {dimension_numbers = #tpu.dot_dimension_numbers<[1], [0], [0], [1], [0, 0, 1, 1], [], []>} : vector<2x16xbf16>, vector<16x64xbf16>, vector<2x64xf32> -> vector<2x64xf32>
    %c0_3 = arith.constant 0 : index
    %c0_4 = arith.constant 0 : index
    %3 = vector.load %arg3[%c0_3, %c0_4] : memref<1x64xf32, #tpu.memory_space<vmem>>, vector<1x64xf32>
    %4 = vector.broadcast %3 : vector<1x64xf32> to vector<2x64xf32>
    %5 = arith.addf %2, %4 : vector<2x64xf32>
    %cst_5 = arith.constant 0.000000e+00 : f32
    %6 = vector.broadcast %cst_5 : f32 to vector<2x64xf32>
    %7 = arith.maximumf %5, %6 : vector<2x64xf32>
    %8 = arith.truncf %7 : vector<2x64xf32> to vector<2x64xbf16>
    %c0_6 = arith.constant 0 : index
    %c0_7 = arith.constant 0 : index
    %9 = vector.load %arg4[%c0_6, %c0_7] : memref<64x64xbf16, #tpu.memory_space<vmem>>, vector<64x64xbf16>
    %cst_8 = arith.constant dense<0.000000e+00> : vector<2x64xf32>
    %10 = tpu.matmul %8, %9, %cst_8 {dimension_numbers = #tpu.dot_dimension_numbers<[1], [0], [0], [1], [0, 0, 1, 1], [], []>} : vector<2x64xbf16>, vector<64x64xbf16>, vector<2x64xf32> -> vector<2x64xf32>
    %c0_9 = arith.constant 0 : index
    %c0_10 = arith.constant 0 : index
    %11 = vector.load %arg5[%c0_9, %c0_10] : memref<1x64xf32, #tpu.memory_space<vmem>>, vector<1x64xf32>
    %12 = vector.broadcast %11 : vector<1x64xf32> to vector<2x64xf32>
    %13 = arith.addf %10, %12 : vector<2x64xf32>
    %cst_11 = arith.constant 0.000000e+00 : f32
    %14 = vector.broadcast %cst_11 : f32 to vector<2x64xf32>
    %15 = arith.maximumf %13, %14 : vector<2x64xf32>
    %16 = arith.truncf %15 : vector<2x64xf32> to vector<2x64xbf16>
    %c0_12 = arith.constant 0 : index
    %c0_13 = arith.constant 0 : index
    %c0_14 = arith.constant 0 : index
    %17 = vector.load %arg6[%c0_12, %c0_13, %c0_14] : memref<3x64x16xbf16, #tpu.memory_space<vmem>>, vector<1x64x16xbf16>
    %18 = vector.shape_cast %17 : vector<1x64x16xbf16> to vector<64x16xbf16>
    %cst_15 = arith.constant dense<0.000000e+00> : vector<2x16xf32>
    %19 = tpu.matmul %16, %18, %cst_15 {dimension_numbers = #tpu.dot_dimension_numbers<[1], [0], [0], [1], [0, 0, 1, 1], [], []>} : vector<2x64xbf16>, vector<64x16xbf16>, vector<2x16xf32> -> vector<2x16xf32>
    %c0_16 = arith.constant 0 : index
    %c0_17 = arith.constant 0 : index
    %c0_18 = arith.constant 0 : index
    %20 = vector.load %arg7[%c0_16, %c0_17, %c0_18] : memref<3x1x16xf32, #tpu.memory_space<vmem>>, vector<1x1x16xf32>
    %21 = vector.shape_cast %20 : vector<1x1x16xf32> to vector<1x16xf32>
    %22 = vector.broadcast %21 : vector<1x16xf32> to vector<2x16xf32>
    %23 = arith.addf %19, %22 : vector<2x16xf32>
    %c1 = arith.constant 1 : index
    %c0_19 = arith.constant 0 : index
    %c0_20 = arith.constant 0 : index
    %24 = vector.load %arg6[%c1, %c0_19, %c0_20] : memref<3x64x16xbf16, #tpu.memory_space<vmem>>, vector<1x64x16xbf16>
    %25 = vector.shape_cast %24 : vector<1x64x16xbf16> to vector<64x16xbf16>
    %cst_21 = arith.constant dense<0.000000e+00> : vector<2x16xf32>
    %26 = tpu.matmul %16, %25, %cst_21 {dimension_numbers = #tpu.dot_dimension_numbers<[1], [0], [0], [1], [0, 0, 1, 1], [], []>} : vector<2x64xbf16>, vector<64x16xbf16>, vector<2x16xf32> -> vector<2x16xf32>
    %c1_22 = arith.constant 1 : index
    %c0_23 = arith.constant 0 : index
    %c0_24 = arith.constant 0 : index
    %27 = vector.load %arg7[%c1_22, %c0_23, %c0_24] : memref<3x1x16xf32, #tpu.memory_space<vmem>>, vector<1x1x16xf32>
    %28 = vector.shape_cast %27 : vector<1x1x16xf32> to vector<1x16xf32>
    %29 = vector.broadcast %28 : vector<1x16xf32> to vector<2x16xf32>
    %30 = arith.addf %26, %29 : vector<2x16xf32>
    %c2 = arith.constant 2 : index
    %c0_25 = arith.constant 0 : index
    %c0_26 = arith.constant 0 : index
    %31 = vector.load %arg6[%c2, %c0_25, %c0_26] : memref<3x64x16xbf16, #tpu.memory_space<vmem>>, vector<1x64x16xbf16>
    %32 = vector.shape_cast %31 : vector<1x64x16xbf16> to vector<64x16xbf16>
    %cst_27 = arith.constant dense<0.000000e+00> : vector<2x16xf32>
    %33 = tpu.matmul %16, %32, %cst_27 {dimension_numbers = #tpu.dot_dimension_numbers<[1], [0], [0], [1], [0, 0, 1, 1], [], []>} : vector<2x64xbf16>, vector<64x16xbf16>, vector<2x16xf32> -> vector<2x16xf32>
    %c2_28 = arith.constant 2 : index
    %c0_29 = arith.constant 0 : index
    %c0_30 = arith.constant 0 : index
    %34 = vector.load %arg7[%c2_28, %c0_29, %c0_30] : memref<3x1x16xf32, #tpu.memory_space<vmem>>, vector<1x1x16xf32>
    %35 = vector.shape_cast %34 : vector<1x1x16xf32> to vector<1x16xf32>
    %36 = vector.broadcast %35 : vector<1x16xf32> to vector<2x16xf32>
    %37 = arith.addf %33, %36 : vector<2x16xf32>
    %38 = arith.maximumf %23, %30 : vector<2x16xf32>
    %39 = arith.maximumf %38, %37 : vector<2x16xf32>
    %40 = arith.subf %23, %39 : vector<2x16xf32>
    %41 = math.exp %40 : vector<2x16xf32>
    %42 = arith.subf %30, %39 : vector<2x16xf32>
    %43 = math.exp %42 : vector<2x16xf32>
    %44 = arith.subf %37, %39 : vector<2x16xf32>
    %45 = math.exp %44 : vector<2x16xf32>
    %46 = arith.addf %41, %43 : vector<2x16xf32>
    %47 = arith.addf %46, %45 : vector<2x16xf32>
    %48 = tpu.reciprocal %47 {approx = true} : vector<2x16xf32> -> vector<2x16xf32>
    %49 = arith.mulf %41, %48 : vector<2x16xf32>
    %c0_31 = arith.constant 0 : index
    %c0_32 = arith.constant 0 : index
    %c0_33 = arith.constant 0 : index
    %50 = vector.load %arg8[%c0_31, %c0_32, %c0_33] : memref<3x2x16xf32, #tpu.memory_space<vmem>>, vector<1x2x16xf32>
    %51 = vector.shape_cast %50 : vector<1x2x16xf32> to vector<2x16xf32>
    %52 = vector.shape_cast %49 : vector<2x16xf32> to vector<1x2x16xf32>
    tpu.vector_store %arg8[%c0_31, %c0_32, %c0_33], %52 {strides = array<i32>} : memref<3x2x16xf32, #tpu.memory_space<vmem>>, vector<1x2x16xf32>,
    %53 = arith.mulf %43, %48 : vector<2x16xf32>
    %c1_34 = arith.constant 1 : index
    %c0_35 = arith.constant 0 : index
    %c0_36 = arith.constant 0 : index
    %54 = vector.load %arg8[%c1_34, %c0_35, %c0_36] : memref<3x2x16xf32, #tpu.memory_space<vmem>>, vector<1x2x16xf32>
    %55 = vector.shape_cast %54 : vector<1x2x16xf32> to vector<2x16xf32>
    %56 = vector.shape_cast %53 : vector<2x16xf32> to vector<1x2x16xf32>
    tpu.vector_store %arg8[%c1_34, %c0_35, %c0_36], %56 {strides = array<i32>} : memref<3x2x16xf32, #tpu.memory_space<vmem>>, vector<1x2x16xf32>,
    %57 = arith.mulf %45, %48 : vector<2x16xf32>
    %c2_37 = arith.constant 2 : index
    %c0_38 = arith.constant 0 : index
    %c0_39 = arith.constant 0 : index
    %58 = vector.load %arg8[%c2_37, %c0_38, %c0_39] : memref<3x2x16xf32, #tpu.memory_space<vmem>>, vector<1x2x16xf32>
    %59 = vector.shape_cast %58 : vector<1x2x16xf32> to vector<2x16xf32>
    %60 = vector.shape_cast %57 : vector<2x16xf32> to vector<1x2x16xf32>
    tpu.vector_store %arg8[%c2_37, %c0_38, %c0_39], %60 {strides = array<i32>} : memref<3x2x16xf32, #tpu.memory_space<vmem>>, vector<1x2x16xf32>,
    return
  }
  func.func @transform_0(%arg0: i32) -> (i32, i32) {
    %c0_i32 = arith.constant 0 : i32
    %c0_i32_0 = arith.constant 0 : i32
    return %arg0, %c0_i32 : i32, i32
  }
  func.func @transform_1(%arg0: i32) -> (i32, i32) {
    %c0_i32 = arith.constant 0 : i32
    %c0_i32_0 = arith.constant 0 : i32
    %c0_i32_1 = arith.constant 0 : i32
    return %c0_i32, %c0_i32_0 : i32, i32
  }
  func.func @transform_2(%arg0: i32) -> (i32, i32) {
    %c0_i32 = arith.constant 0 : i32
    %c0_i32_0 = arith.constant 0 : i32
    %c0_i32_1 = arith.constant 0 : i32
    return %c0_i32, %c0_i32_0 : i32, i32
  }
  func.func @transform_3(%arg0: i32) -> (i32, i32) {
    %c0_i32 = arith.constant 0 : i32
    %c0_i32_0 = arith.constant 0 : i32
    %c0_i32_1 = arith.constant 0 : i32
    return %c0_i32, %c0_i32_0 : i32, i32
  }
  func.func @transform_4(%arg0: i32) -> (i32, i32) {
    %c0_i32 = arith.constant 0 : i32
    %c0_i32_0 = arith.constant 0 : i32
    %c0_i32_1 = arith.constant 0 : i32
    return %c0_i32, %c0_i32_0 : i32, i32
  }
  func.func @transform_5(%arg0: i32) -> (i32, i32, i32) {
    %c0_i32 = arith.constant 0 : i32
    %c0_i32_0 = arith.constant 0 : i32
    %c0_i32_1 = arith.constant 0 : i32
    %c0_i32_2 = arith.constant 0 : i32
    return %c0_i32, %c0_i32_0, %c0_i32_1 : i32, i32, i32
  }
  func.func @transform_6(%arg0: i32) -> (i32, i32, i32) {
    %c0_i32 = arith.constant 0 : i32
    %c0_i32_0 = arith.constant 0 : i32
    %c0_i32_1 = arith.constant 0 : i32
    %c0_i32_2 = arith.constant 0 : i32
    return %c0_i32, %c0_i32_0, %c0_i32_1 : i32, i32, i32
  }
  func.func @transform_7(%arg0: i32) -> (i32, i32, i32) {
    %c0_i32 = arith.constant 0 : i32
    %c0_i32_0 = arith.constant 0 : i32
    %c0_i32_1 = arith.constant 0 : i32
    return %c0_i32, %arg0, %c0_i32_0 : i32, i32, i32
  }
}

</mosaic_0001>

<llo_original>
// kernel: tpu_custom_call.1
$region0: #{tpu_custom_call.1}
  #allocation0 [shape = 'u32[]', space=smem, size = 0x4, offset = 0x4, fixed_abs, tag = 'smem constant byte address 0x4 - core index']
  #allocation1 [shape = 'u32[144,128]{1,0:T(1,128)}', space=vmem, size = 0x12000, scoped, tag = 'internal scratch']
  %s0 = inlined_call_operand.vmem [shape: bf16[2,16], index: 0, kind: input, shape index: {}]
  %s1 = inlined_call_operand.vmem [shape: bf16[16,64], index: 1, kind: input, shape index: {}]
  %s2 = inlined_call_operand.vmem [shape: f32[1,64], index: 2, kind: input, shape index: {}]
  %s3 = inlined_call_operand.vmem [shape: bf16[64,64], index: 3, kind: input, shape index: {}]
  %s4 = inlined_call_operand.vmem [shape: f32[1,64], index: 4, kind: input, shape index: {}]
  %s5 = inlined_call_operand.vmem [shape: bf16[3,64,16], index: 5, kind: input, shape index: {}]
  %s6 = inlined_call_operand.vmem [shape: f32[3,1,16], index: 6, kind: input, shape index: {}]
  %s7 = inlined_call_operand.hbm [shape: f32[3,2,16], index: 7, kind: output, shape index: {}]
  %s8 = sld [smem:[#allocation0]]
  $region38: #{tpu_custom_call.1} parent=0
    _
  %s10 = ssub.s32 1, %s8
  %s11 = scalar_select 0, %s10, %s8
  $region1: #{tpu_custom_call.1} parent=0
    #allocation2 [shape = 'u8[3072]{0}', space=vmem, size = 0xc00, scoped, tag = 'output window, operand 0, single buffered']
    #allocation3 [shape = 's32[1]{0}', space=sflag, size = 0x4, scoped, tag = 'scoped memory for tpu_custom_call.1']
    %12 = vsyncpa [#allocation3], 0
    // Predicated region
    $region2: #{tpu_custom_call.1} parent=1 // pred_check
      _
    $region3: #{tpu_custom_call.1} parent=1 // pred_check_branch
      %14 = sbr.rel (0) target = $region5
    $region4: #{tpu_custom_call.1} parent=1 // pred_region
      _
    $region5: #{tpu_custom_call.1} parent=1 // pred_fallthru
      _
    // Predicated region
    $region6: #{tpu_custom_call.1} parent=1 // pred_check
      _
    $region7: #{tpu_custom_call.1} parent=1 // pred_check_branch
      %16 = sbr.rel (0) target = $region9
    $region8: #{tpu_custom_call.1} parent=1 // pred_region
      _
    $region9: #{tpu_custom_call.1} parent=1 // pred_fallthru
      _
    // Predicated region
    $region10: #{tpu_custom_call.1} parent=1 // pred_check
      _
    $region11: #{tpu_custom_call.1} parent=1 // pred_check_branch
      %18 = sbr.rel (0) target = $region13
    $region12: #{tpu_custom_call.1} parent=1 // pred_region
      _
    $region13: #{tpu_custom_call.1} parent=1 // pred_fallthru
      _
    // Predicated region
    $region14: #{tpu_custom_call.1} parent=1 // pred_check
      _
    $region15: #{tpu_custom_call.1} parent=1 // pred_check_branch
      %20 = sbr.rel (0) target = $region17
    $region16: #{tpu_custom_call.1} parent=1 // pred_region
      _
    $region17: #{tpu_custom_call.1} parent=1 // pred_fallthru
      _
    // Predicated region
    $region18: #{tpu_custom_call.1} parent=1 // pred_check
      _
    $region19: #{tpu_custom_call.1} parent=1 // pred_check_branch
      %22 = sbr.rel (0) target = $region21
    $region20: #{tpu_custom_call.1} parent=1 // pred_region
      _
    $region21: #{tpu_custom_call.1} parent=1 // pred_fallthru
      _
    // Predicated region
    $region22: #{tpu_custom_call.1} parent=1 // pred_check
      _
    $region23: #{tpu_custom_call.1} parent=1 // pred_check_branch
      %24 = sbr.rel (0) target = $region25
    $region24: #{tpu_custom_call.1} parent=1 // pred_region
      _
    $region25: #{tpu_custom_call.1} parent=1 // pred_fallthru
      _
    // Predicated region
    $region26: #{tpu_custom_call.1} parent=1 // pred_check
      _
    $region27: #{tpu_custom_call.1} parent=1 // pred_check_branch
      %26 = sbr.rel (0) target = $region29
    $region28: #{tpu_custom_call.1} parent=1 // pred_region
      _
    $region29: #{tpu_custom_call.1} parent=1 // pred_fallthru
      _
    %v28 = vld [vmem:[%s0] sm:$0x1]
    %v29 = vld [vmem:[%s1] sm:$0xf]
    %v30 = vld [vmem:[%s1 + $0x4] sm:$0xf]
    %v31 = vld [vmem:[%s2] sm:$0x1]
    %v33 = vlaneseq
    %v34 = vshrl.u32 %v33, 7
    %v35 = vsub.s32 0, %v34
    %v36 = vrot.slane %v31, %v35
    %v40 = vunpack.c.l.b16 %v29
    %v41 = vunpack.c.l.b16 %v30
    %v42 = vpack.c.b16 %v41, %v40
    %vm44 = vcmask 130048
    %v46 = vsel %vm44, %v28, 0
    %48 = vmatprep.subr.bf16.mxu0 0
    %49 = vmatpush1.bf16.msra.mxu0 %v42
    %50 = vmatprep.subr.bf16.mxu0 0
    %51 = vmatpush1.bf16.msra.mxu0 0
    %52 = vmatprep.subr.bf16.mxu0 0
    %53 = vmatpush1.bf16.msra.mxu0 0
    %54 = vmatprep.subr.bf16.mxu0 0
    %55 = vmatpush1.bf16.msra.mxu0 0
    %56 = vmatprep.subr.bf16.mxu0 0
    %57 = vmatpush1.bf16.msra.mxu0 0
    %58 = vmatprep.subr.bf16.mxu0 0
    %59 = vmatpush1.bf16.msra.mxu0 0
    %60 = vmatprep.subr.bf16.mxu0 0
    %61 = vmatpush1.bf16.msra.mxu0 0
    %62 = vmatprep.subr.bf16.mxu0 0
    %63 = vmatpush1.bf16.msra.mxu0 0
    %64 = vmatprep.subr.bf16.mxu0 0
    %65 = vmatpush1.bf16.msra.mxu0 0
    %66 = vmatprep.subr.bf16.mxu0 0
    %67 = vmatpush1.bf16.msra.mxu0 0
    %68 = vmatprep.subr.bf16.mxu0 0
    %69 = vmatpush1.bf16.msra.mxu0 0
    %70 = vmatprep.subr.bf16.mxu0 0
    %71 = vmatpush1.bf16.msra.mxu0 0
    %72 = vmatprep.subr.bf16.mxu0 0
    %73 = vmatpush1.bf16.msra.mxu0 0
    %74 = vmatprep.subr.bf16.mxu0 0
    %75 = vmatpush1.bf16.msra.mxu0 0
    %76 = vmatprep.subr.bf16.mxu0 0
    %77 = vmatpush1.bf16.msra.mxu0 0
    %78 = vmatprep.subr.bf16.mxu0 0
    %79 = vmatpush1.bf16.msra.mxu0 0
    %80 = vmatprep.mubr.bf16.mxu0 0
    %81 = vmatmul.mubr.bf16.gmra.mrb[0].mxu0 %v46
    %v82 = vpop.f32.mrb[0].mxu0
    %v83 = vadd.f32 %v36, %v82
    %v84 = vpop.f32.mrb[0].mxu0
    %v85 = vpop.f32.mrb[0].mxu0
    %v86 = vpop.f32.mrb[0].mxu0
    %87 = vdwg.mxu0
    %v88 = vmax.f32 %v83, 0.0
    %v89 = vpack.c.bf16 %v88, %v88
    %v90 = vld [vmem:[%s3] sm:$0xf]
    %v91 = vld [vmem:[%s3 + $0x4] sm:$0xf]
    %v92 = vld [vmem:[%s3 + $0x8] sm:$0xf]
    %v93 = vld [vmem:[%s3 + $0xc] sm:$0xf]
    %v94 = vld [vmem:[%s3 + $0x10] sm:$0xf]
    %v95 = vld [vmem:[%s3 + $0x14] sm:$0xf]
    %v96 = vld [vmem:[%s3 + $0x18] sm:$0xf]
    %v97 = vld [vmem:[%s3 + $0x1c] sm:$0xf]
    %v98 = vld [vmem:[%s4] sm:$0x1]
    %v100 = vlaneseq
    %v101 = vshrl.u32 %v100, 7
    %v102 = vsub.s32 0, %v101
    %v103 = vrot.slane %v98, %v102
    %v113 = vunpack.c.l.b16 %v90
    %v114 = vunpack.c.l.b16 %v91
    %v115 = vunpack.c.l.b16 %v92
    %v116 = vunpack.c.l.b16 %v93
    %v117 = vunpack.c.l.b16 %v94
    %v118 = vunpack.c.l.b16 %v95
    %v119 = vunpack.c.l.b16 %v96
    %v120 = vunpack.c.l.b16 %v97
    %v121 = vpack.c.b16 %v114, %v113
    %v122 = vpack.c.b16 %v116, %v115
    %v123 = vpack.c.b16 %v118, %v117
    %v124 = vpack.c.b16 %v120, %v119
    %vm129 = vcmask 523264
    %v131 = vsel %vm129, %v89, 0
    %133 = vmatprep.subr.bf16.mxu0 0
    %134 = vmatpush1.bf16.msra.mxu0 %v121
    %135 = vmatprep.subr.bf16.mxu0 0
    %136 = vmatpush1.bf16.msra.mxu0 %v122
    %137 = vmatprep.subr.bf16.mxu0 0
    %138 = vmatpush1.bf16.msra.mxu0 %v123
    %139 = vmatprep.subr.bf16.mxu0 0
    %140 = vmatpush1.bf16.msra.mxu0 %v124
    %141 = vmatprep.subr.bf16.mxu0 0
    %142 = vmatpush1.bf16.msra.mxu0 0
    %143 = vmatprep.subr.bf16.mxu0 0
    %144 = vmatpush1.bf16.msra.mxu0 0
    %145 = vmatprep.subr.bf16.mxu0 0
    %146 = vmatpush1.bf16.msra.mxu0 0
    %147 = vmatprep.subr.bf16.mxu0 0
    %148 = vmatpush1.bf16.msra.mxu0 0
    %149 = vmatprep.subr.bf16.mxu0 0
    %150 = vmatpush1.bf16.msra.mxu0 0
    %151 = vmatprep.subr.bf16.mxu0 0
    %152 = vmatpush1.bf16.msra.mxu0 0
    %153 = vmatprep.subr.bf16.mxu0 0
    %154 = vmatpush1.bf16.msra.mxu0 0
    %155 = vmatprep.subr.bf16.mxu0 0
    %156 = vmatpush1.bf16.msra.mxu0 0
    %157 = vmatprep.subr.bf16.mxu0 0
    %158 = vmatpush1.bf16.msra.mxu0 0
    %159 = vmatprep.subr.bf16.mxu0 0
    %160 = vmatpush1.bf16.msra.mxu0 0
    %161 = vmatprep.subr.bf16.mxu0 0
    %162 = vmatpush1.bf16.msra.mxu0 0
    %163 = vmatprep.subr.bf16.mxu0 0
    %164 = vmatpush1.bf16.msra.mxu0 0
    %165 = vmatprep.mubr.bf16.mxu0 0
    %166 = vmatmul.mubr.bf16.gmra.mrb[0].mxu0 %v131
    %v167 = vpop.f32.mrb[0].mxu0
    %v168 = vadd.f32 %v103, %v167
    %v169 = vpop.f32.mrb[0].mxu0
    %v170 = vpop.f32.mrb[0].mxu0
    %v171 = vpop.f32.mrb[0].mxu0
    %172 = vdwg.mxu0
    %v173 = vmax.f32 %v168, 0.0
    %v174 = vpack.c.bf16 %v173, %v173
    %v175 = vld [vmem:[%s5] sm:$0xf]
    %v176 = vld [vmem:[%s5 + $0x4] sm:$0xf]
    %v177 = vld [vmem:[%s5 + $0x8] sm:$0xf]
    %v178 = vld [vmem:[%s5 + $0xc] sm:$0xf]
    %v179 = vld [vmem:[%s5 + $0x10] sm:$0xf]
    %v180 = vld [vmem:[%s5 + $0x14] sm:$0xf]
    %v181 = vld [vmem:[%s5 + $0x18] sm:$0xf]
    %v182 = vld [vmem:[%s5 + $0x1c] sm:$0xf]
    %v183 = vld [vmem:[%s6] sm:$0x1]
    %v185 = vlaneseq
    %v186 = vshrl.u32 %v185, 7
    %v187 = vsub.s32 0, %v186
    %v188 = vrot.slane %v183, %v187
    %v198 = vunpack.c.l.b16 %v175
    %v199 = vunpack.c.l.b16 %v176
    %v200 = vunpack.c.l.b16 %v177
    %v201 = vunpack.c.l.b16 %v178
    %v202 = vunpack.c.l.b16 %v179
    %v203 = vunpack.c.l.b16 %v180
    %v204 = vunpack.c.l.b16 %v181
    %v205 = vunpack.c.l.b16 %v182
    %v206 = vpack.c.b16 %v199, %v198
    %v207 = vpack.c.b16 %v201, %v200
    %v208 = vpack.c.b16 %v203, %v202
    %v209 = vpack.c.b16 %v205, %v204
    %v215 = vsel %vm129, %v174, 0
    %217 = vmatprep.subr.bf16.mxu0 0
    %218 = vmatpush1.bf16.msra.mxu0 %v206
    %219 = vmatprep.subr.bf16.mxu0 0
    %220 = vmatpush1.bf16.msra.mxu0 %v207
    %221 = vmatprep.subr.bf16.mxu0 0
    %222 = vmatpush1.bf16.msra.mxu0 %v208
    %223 = vmatprep.subr.bf16.mxu0 0
    %224 = vmatpush1.bf16.msra.mxu0 %v209
    %225 = vmatprep.subr.bf16.mxu0 0
    %226 = vmatpush1.bf16.msra.mxu0 0
    %227 = vmatprep.subr.bf16.mxu0 0
    %228 = vmatpush1.bf16.msra.mxu0 0
    %229 = vmatprep.subr.bf16.mxu0 0
    %230 = vmatpush1.bf16.msra.mxu0 0
    %231 = vmatprep.subr.bf16.mxu0 0
    %232 = vmatpush1.bf16.msra.mxu0 0
    %233 = vmatprep.subr.bf16.mxu0 0
    %234 = vmatpush1.bf16.msra.mxu0 0
    %235 = vmatprep.subr.bf16.mxu0 0
    %236 = vmatpush1.bf16.msra.mxu0 0
    %237 = vmatprep.subr.bf16.mxu0 0
    %238 = vmatpush1.bf16.msra.mxu0 0
    %239 = vmatprep.subr.bf16.mxu0 0
    %240 = vmatpush1.bf16.msra.mxu0 0
    %241 = vmatprep.subr.bf16.mxu0 0
    %242 = vmatpush1.bf16.msra.mxu0 0
    %243 = vmatprep.subr.bf16.mxu0 0
    %244 = vmatpush1.bf16.msra.mxu0 0
    %245 = vmatprep.subr.bf16.mxu0 0
    %246 = vmatpush1.bf16.msra.mxu0 0
    %247 = vmatprep.subr.bf16.mxu0 0
    %248 = vmatpush1.bf16.msra.mxu0 0
    %249 = vmatprep.mubr.bf16.mxu0 0
    %250 = vmatmul.mubr.bf16.gmra.mrb[0].mxu0 %v215
    %v251 = vpop.f32.mrb[0].mxu0
    %v252 = vadd.f32 %v188, %v251
    %v253 = vpop.f32.mrb[0].mxu0
    %v254 = vpop.f32.mrb[0].mxu0
    %v255 = vpop.f32.mrb[0].mxu0
    %256 = vdwg.mxu0
    %s257 = scalar_lea.vmem %s5, 32
    %v258 = vld [vmem:[%s257] sm:$0xf]
    %v259 = vld [vmem:[%s257 + $0x4] sm:$0xf]
    %v260 = vld [vmem:[%s257 + $0x8] sm:$0xf]
    %v261 = vld [vmem:[%s257 + $0xc] sm:$0xf]
    %v262 = vld [vmem:[%s257 + $0x10] sm:$0xf]
    %v263 = vld [vmem:[%s257 + $0x14] sm:$0xf]
    %v264 = vld [vmem:[%s257 + $0x18] sm:$0xf]
    %v265 = vld [vmem:[%s257 + $0x1c] sm:$0xf]
    %s266 = scalar_lea.vmem %s6, 1
    %v267 = vld [vmem:[%s266] sm:$0x1]
    %v269 = vlaneseq
    %v270 = vshrl.u32 %v269, 7
    %v271 = vsub.s32 0, %v270
    %v272 = vrot.slane %v267, %v271
    %v282 = vunpack.c.l.b16 %v258
    %v283 = vunpack.c.l.b16 %v259
    %v284 = vunpack.c.l.b16 %v260
    %v285 = vunpack.c.l.b16 %v261
    %v286 = vunpack.c.l.b16 %v262
    %v287 = vunpack.c.l.b16 %v263
    %v288 = vunpack.c.l.b16 %v264
    %v289 = vunpack.c.l.b16 %v265
    %v290 = vpack.c.b16 %v283, %v282
    %v291 = vpack.c.b16 %v285, %v284
    %v292 = vpack.c.b16 %v287, %v286
    %v293 = vpack.c.b16 %v289, %v288
    %298 = vmatprep.subr.bf16.mxu0 0
    %299 = vmatpush1.bf16.msra.mxu0 %v290
    %300 = vmatprep.subr.bf16.mxu0 0
    %301 = vmatpush1.bf16.msra.mxu0 %v291
    %302 = vmatprep.subr.bf16.mxu0 0
    %303 = vmatpush1.bf16.msra.mxu0 %v292
    %304 = vmatprep.subr.bf16.mxu0 0
    %305 = vmatpush1.bf16.msra.mxu0 %v293
    %306 = vmatprep.subr.bf16.mxu0 0
    %307 = vmatpush1.bf16.msra.mxu0 0
    %308 = vmatprep.subr.bf16.mxu0 0
    %309 = vmatpush1.bf16.msra.mxu0 0
    %310 = vmatprep.subr.bf16.mxu0 0
    %311 = vmatpush1.bf16.msra.mxu0 0
    %312 = vmatprep.subr.bf16.mxu0 0
    %313 = vmatpush1.bf16.msra.mxu0 0
    %314 = vmatprep.subr.bf16.mxu0 0
    %315 = vmatpush1.bf16.msra.mxu0 0
    %316 = vmatprep.subr.bf16.mxu0 0
    %317 = vmatpush1.bf16.msra.mxu0 0
    %318 = vmatprep.subr.bf16.mxu0 0
    %319 = vmatpush1.bf16.msra.mxu0 0
    %320 = vmatprep.subr.bf16.mxu0 0
    %321 = vmatpush1.bf16.msra.mxu0 0
    %322 = vmatprep.subr.bf16.mxu0 0
    %323 = vmatpush1.bf16.msra.mxu0 0
    %324 = vmatprep.subr.bf16.mxu0 0
    %325 = vmatpush1.bf16.msra.mxu0 0
    %326 = vmatprep.subr.bf16.mxu0 0
    %327 = vmatpush1.bf16.msra.mxu0 0
    %328 = vmatprep.subr.bf16.mxu0 0
    %329 = vmatpush1.bf16.msra.mxu0 0
    %330 = vmatprep.mubr.bf16.mxu0 0
    %331 = vmatmul.mubr.bf16.gmra.mrb[0].mxu0 %v215
    %v332 = vpop.f32.mrb[0].mxu0
    %v333 = vadd.f32 %v272, %v332
    %v334 = vpop.f32.mrb[0].mxu0
    %v335 = vpop.f32.mrb[0].mxu0
    %v336 = vpop.f32.mrb[0].mxu0
    %337 = vdwg.mxu0
    %s338 = scalar_lea.vmem %s5, 64
    %v339 = vld [vmem:[%s338] sm:$0xf]
    %v340 = vld [vmem:[%s338 + $0x4] sm:$0xf]
    %v341 = vld [vmem:[%s338 + $0x8] sm:$0xf]
    %v342 = vld [vmem:[%s338 + $0xc] sm:$0xf]
    %v343 = vld [vmem:[%s338 + $0x10] sm:$0xf]
    %v344 = vld [vmem:[%s338 + $0x14] sm:$0xf]
    %v345 = vld [vmem:[%s338 + $0x18] sm:$0xf]
    %v346 = vld [vmem:[%s338 + $0x1c] sm:$0xf]
    %s347 = scalar_lea.vmem %s6, 2
    %v348 = vld [vmem:[%s347] sm:$0x1]
    %v350 = vlaneseq
    %v351 = vshrl.u32 %v350, 7
    %v352 = vsub.s32 0, %v351
    %v353 = vrot.slane %v348, %v352
    %v363 = vunpack.c.l.b16 %v339
    %v364 = vunpack.c.l.b16 %v340
    %v365 = vunpack.c.l.b16 %v341
    %v366 = vunpack.c.l.b16 %v342
    %v367 = vunpack.c.l.b16 %v343
    %v368 = vunpack.c.l.b16 %v344
    %v369 = vunpack.c.l.b16 %v345
    %v370 = vunpack.c.l.b16 %v346
    %v371 = vpack.c.b16 %v364, %v363
    %v372 = vpack.c.b16 %v366, %v365
    %v373 = vpack.c.b16 %v368, %v367
    %v374 = vpack.c.b16 %v370, %v369
    %379 = vmatprep.subr.bf16.mxu0 0
    %380 = vmatpush1.bf16.msra.mxu0 %v371
    %381 = vmatprep.subr.bf16.mxu0 0
    %382 = vmatpush1.bf16.msra.mxu0 %v372
    %383 = vmatprep.subr.bf16.mxu0 0
    %384 = vmatpush1.bf16.msra.mxu0 %v373
    %385 = vmatprep.subr.bf16.mxu0 0
    %386 = vmatpush1.bf16.msra.mxu0 %v374
    %387 = vmatprep.subr.bf16.mxu0 0
    %388 = vmatpush1.bf16.msra.mxu0 0
    %389 = vmatprep.subr.bf16.mxu0 0
    %390 = vmatpush1.bf16.msra.mxu0 0
    %391 = vmatprep.subr.bf16.mxu0 0
    %392 = vmatpush1.bf16.msra.mxu0 0
    %393 = vmatprep.subr.bf16.mxu0 0
    %394 = vmatpush1.bf16.msra.mxu0 0
    %395 = vmatprep.subr.bf16.mxu0 0
    %396 = vmatpush1.bf16.msra.mxu0 0
    %397 = vmatprep.subr.bf16.mxu0 0
    %398 = vmatpush1.bf16.msra.mxu0 0
    %399 = vmatprep.subr.bf16.mxu0 0
    %400 = vmatpush1.bf16.msra.mxu0 0
    %401 = vmatprep.subr.bf16.mxu0 0
    %402 = vmatpush1.bf16.msra.mxu0 0
    %403 = vmatprep.subr.bf16.mxu0 0
    %404 = vmatpush1.bf16.msra.mxu0 0
    %405 = vmatprep.subr.bf16.mxu0 0
    %406 = vmatpush1.bf16.msra.mxu0 0
    %407 = vmatprep.subr.bf16.mxu0 0
    %408 = vmatpush1.bf16.msra.mxu0 0
    %409 = vmatprep.subr.bf16.mxu0 0
    %410 = vmatpush1.bf16.msra.mxu0 0
    %411 = vmatprep.mubr.bf16.mxu0 0
    %412 = vmatmul.mubr.bf16.gmra.mrb[0].mxu0 %v215
    %v413 = vpop.f32.mrb[0].mxu0
    %v414 = vadd.f32 %v353, %v413
    %v415 = vpop.f32.mrb[0].mxu0
    %v416 = vpop.f32.mrb[0].mxu0
    %v417 = vpop.f32.mrb[0].mxu0
    %418 = vdwg.mxu0
    %v419 = vmax.f32 %v252, %v333
    %v420 = vmax.f32 %v419, %v414
    %v421 = vsub.f32 %v252, %v420
    %v422 = vmul.f32 %v421, 1.442695
    %v423 = vpow.pop %v422
    %v424 = vsub.f32 %v333, %v420
    %v425 = vmul.f32 %v424, 1.442695
    %v426 = vpow.pop %v425
    %v427 = vsub.f32 %v414, %v420
    %v428 = vmul.f32 %v427, 1.442695
    %v429 = vpow.pop %v428
    %v430 = vadd.f32 %v423, %v426
    %v431 = vadd.f32 %v430, %v429
    %v432 = vrcp.pop %v431
    %v433 = vmul.f32 %v423, %v432
    %vm434 = vcmask 123904
    %435 = vst.msk [vmem:[#allocation2] sm:$0x3] %vm434, %v433
    %v436 = vmul.f32 %v426, %v432
    %s437 = scalar_lea.vmem [#allocation2], 2
    %438 = vst.msk [vmem:[%s437] sm:$0x3] %vm434, %v436
    %v439 = vmul.f32 %v429, %v432
    %s440 = scalar_lea.vmem [#allocation2], 4
    %441 = vst.msk [vmem:[%s440] sm:$0x3] %vm434, %v439
    // Predicated region
    $region30: #{tpu_custom_call.1} parent=1 // pred_check
      _
    $region31: #{tpu_custom_call.1} parent=1 // pred_check_branch
      %443 = sbr.rel (0) target = $region33
    $region32: #{tpu_custom_call.1} parent=1 // pred_region
      %s445 = ssub.s32 96, 96
      %446 = vsyncadd [#allocation3], %s445
      %s447 = sshll.u32 [#allocation2], 4
      %s448 = int_to_ptr.vmem [resolvable:$true] %s447
      %453 = dma.vmem_to_hbm [thread:$0]  %s448, 96, %s7, [#allocation3], 32, 32, 2
    $region33: #{tpu_custom_call.1} parent=1 // pred_fallthru
      _
    // Predicated region
    $region34: #{tpu_custom_call.1} parent=1 // pred_check
      _
    $region35: #{tpu_custom_call.1} parent=1 // pred_check_branch
      %455 = sbr.rel (0) target = $region37
    $region36: #{tpu_custom_call.1} parent=1 // pred_region
      %456 = dma.done [#allocation3], 96
    $region37: #{tpu_custom_call.1} parent=1 // pred_fallthru
      _
    %457 = vsyncpa [#allocation3], 1

</llo_original>
